<compile_context>
chip_gen: v6e
topology: v6e:2x2x1
jax: 0.10.0
libtpu: 0.0.40
codegen_flags: <defaults>
</compile_context>

<pallas_src>
import functools

import jax
import jax.numpy as jnp
from jax.experimental import pallas as pl
from jax.experimental.pallas import tpu as pltpu


def _round_up(v, m):
    return ((v + m - 1) // m) * m


# ---------------------------------------------------------------------------
# Kernels
# ---------------------------------------------------------------------------

def _mlpbase_fused_kernel(x_ref, w1_ref, b1_ref, w2_ref, b2_ref, wcl_ref,
                          bcl_ref, out_ref, *, half):
    """2H <= 128: both branches fused into 128-lane matmuls.

    Lanes [0:half] are the actor branch, [half:2*half] the critic branch
    (zero-padded if H < half).  Output: actor hidden in lanes [0:half],
    value scalar written into lane `half`.
    """
    # Cast x (and h1) to the weight compute dtype inside the kernel (VPU slot).
    x = x_ref[...].astype(w1_ref.dtype)

    h1 = jnp.tanh(
        jnp.dot(x, w1_ref[...], preferred_element_type=jnp.float32)
        + b1_ref[...])
    h2 = jnp.tanh(
        jnp.dot(h1.astype(w2_ref.dtype), w2_ref[...],
                preferred_element_type=jnp.float32)
        + b2_ref[...])

    # Value head (H -> 1): VPU multiply + lane reduction; wcl is zero outside
    # the critic lanes.  Scalar bias lives in SMEM.
    value = jnp.sum(h2 * wcl_ref[...], axis=-1, keepdims=True) + bcl_ref[0]

    # Lane-dense store: actor lanes untouched, value dropped into lane `half`
    # (it overwrites critic-hidden lane 0, which is discarded anyway).
    lane = jax.lax.broadcasted_iota(jnp.int32, h2.shape, 1)
    out_ref[...] = jnp.where(lane == half, value, h2).astype(out_ref.dtype)


def _mlpbase_split_kernel(x_ref, w1_ref, b1_ref, w2a_ref, w2c_ref, b2a_ref,
                          b2c_ref, wcl_ref, bcl_ref, out_ref, *, hp):
    """H > 64 path: layer 1 stays fused (actor lanes [0:hp], critic [hp:2hp]),
    layer 2 is two half-lane matmuls (no block-diagonal zero blocks).
    Output: actor hidden in lanes [0:hp], value scalar in lane hp."""
    x = x_ref[...].astype(w1_ref.dtype)

    h1 = jnp.tanh(
        jnp.dot(x, w1_ref[...], preferred_element_type=jnp.float32)
        + b1_ref[...])

    h1a = h1[:, :hp].astype(w2a_ref.dtype)
    h1c = h1[:, hp:].astype(w2c_ref.dtype)

    h2a = jnp.tanh(
        jnp.dot(h1a, w2a_ref[...], preferred_element_type=jnp.float32)
        + b2a_ref[...])
    h2c = jnp.tanh(
        jnp.dot(h1c, w2c_ref[...], preferred_element_type=jnp.float32)
        + b2c_ref[...])

    value = jnp.sum(h2c * wcl_ref[...], axis=-1, keepdims=True) + bcl_ref[0]

    # Both stores are 128-lane-aligned (hp is a multiple of 128).
    out_ref[:, :hp] = h2a.astype(out_ref.dtype)
    lane = jax.lax.broadcasted_iota(jnp.int32, (h2a.shape[0], 128), 1)
    out_ref[:, hp:] = jnp.where(lane == 0, value, 0.0).astype(out_ref.dtype)


# ---------------------------------------------------------------------------
# Wrapper
# ---------------------------------------------------------------------------

def _pick_block_rows(batch, block_b):
    """Batch tile: multiple of 8 sublanes, capped at block_b, and aiming for
    >= 4 grid steps so the 'parallel' axis can feed both v7x TensorCores."""
    tb = _round_up(pl.cdiv(batch, 4), 8)
    tb = min(tb, block_b)
    tb = max(tb, 8)
    return min(tb, _round_up(batch, 8))


def mlp_base_forward(x, packed, rnn_hxs=None, masks=None, *, hidden_size,
                     block_b=4096):
    """Pallas implementation of MLPBase.forward (recurrent=False).

    Returns (critic_value, hidden_actor, rnn_hxs); rnn_hxs/masks are accepted
    for API parity with the torch module and passed through / ignored.
    """
    # TODO(synk): recurrent=True path (nn.GRUCell loop over time) not implemented.
    del masks
    B, num_inputs = x.shape
    H = hidden_size

    TB = _pick_block_rows(B, block_b)
    grid = (pl.cdiv(B, TB),)
    batch_map = lambda i: (i, 0)
    const_map = lambda i: (0, 0)

    fused = "w2" in packed
    if fused:
        half = packed["w1"].shape[1] // 2            # = 64
        out_w = 2 * half                             # = 128, lane dense
        val_lane = half
        weights = (packed["w1"], packed["b1"], packed["w2"], packed["b2"],
                   packed["wcl"])
        kernel = functools.partial(_mlpbase_fused_kernel, half=half)
        flops = 2 * B * (num_inputs * out_w + out_w * out_w + out_w)
    else:
        hp = packed["w2a"].shape[0]                  # H padded to 128 lanes
        out_w = hp + 128
        val_lane = hp
        weights = (packed["w1"], packed["b1"], packed["w2a"], packed["w2c"],
                   packed["b2a"], packed["b2c"], packed["wcl"])
        kernel = functools.partial(_mlpbase_split_kernel, hp=hp)
        flops = 2 * B * (num_inputs * 2 * hp + 2 * hp * hp + hp)

    w_bytes = sum(int(w.size) * w.dtype.itemsize for w in weights) + 4
    cost = pl.CostEstimate(
        flops=int(flops),
        transcendentals=int(2 * B * out_w),          # two tanh layers
        bytes_accessed=int(x.size * x.dtype.itemsize + w_bytes + B * out_w * 4),
    )

    in_specs = (
        [pl.BlockSpec((TB, num_inputs), batch_map)]
        + [pl.BlockSpec(w.shape, const_map) for w in weights]
        + [pl.BlockSpec(memory_space=pltpu.MemorySpace.SMEM)]   # bcl scalar
    )

    out = pl.pallas_call(
        kernel,
        out_shape=jax.ShapeDtypeStruct((B, out_w), jnp.float32),
        grid=grid,
        in_specs=in_specs,
        out_specs=pl.BlockSpec((TB, out_w), batch_map),
        compiler_params=pltpu.CompilerParams(
            dimension_semantics=("parallel",),
            vmem_limit_bytes=48 * 1024 * 1024),
        cost_estimate=cost,
    )(x, *weights, packed["bcl"])

    value = out[:, val_lane:val_lane + 1]
    actor = out[:, :H]
    return value, actor, rnn_hxs


# ---------------------------------------------------------------------------
# Parameter construction (matches torch init_normc_ + zero biases)
# ---------------------------------------------------------------------------

def init_normc(key, out_features, in_features, gain=1.0):
    """init_normc_: normal(0,1), then each output row normalized to unit L2.
    Returned transposed to (in, out) for the x @ W kernel layout."""
    w = jax.random.normal(key, (out_features, in_features), jnp.float32)
    w = gain * w / jnp.sqrt(jnp.sum(w * w, axis=1, keepdims=True))
    return w.T


def make_params(key, num_inputs, hidden_size):
    ks = jax.random.split(key, 5)
    return {
        # critic
        "w1c": init_normc(ks[0], hidden_size, num_inputs),
        "b1c": jnp.zeros((1, hidden_size), jnp.float32),
        "w2c": init_normc(ks[1], hidden_size, hidden_size),
        "b2c": jnp.zeros((1, hidden_size), jnp.float32),
        "wcl": init_normc(ks[2], 1, hidden_size),            # (H, 1)
        "bcl": jnp.zeros((1, 1), jnp.float32),
        # actor
        "w1a": init_normc(ks[3], hidden_size, num_inputs),
        "b1a": jnp.zeros((1, hidden_size), jnp.float32),
        "w2a": init_normc(ks[4], hidden_size, hidden_size),
        "b2a": jnp.zeros((1, hidden_size), jnp.float32),
    }


def pack_params(p, dtype=jnp.bfloat16):
    """Fuse per-branch weights into the lane-dense layout used by the kernel.
    Matmul operands are stored in `dtype` (default bf16); biases / value-head
    row stay f32 (they feed the f32 accumulate / reduce path)."""
    H = p["w2a"].shape[1]
    num_inputs = p["w1a"].shape[0]
    f32 = jnp.float32

    if 2 * H <= 128:
        # Fused path: actor in lanes [0:H] (pad to 64), critic in [64:64+H].
        half, lw = 64, 128

        def place(wa, wc):
            out = jnp.zeros((wa.shape[0], lw), f32)
            out = out.at[:, :H].set(wa)
            out = out.at[:, half:half + H].set(wc)
            return out

        w1 = place(p["w1a"], p["w1c"]).astype(dtype)
        b1 = place(p["b1a"], p["b1c"])
        w2 = jnp.zeros((lw, lw), f32)
        w2 = w2.at[:H, :H].set(p["w2a"])
        w2 = w2.at[half:half + H, half:half + H].set(p["w2c"])
        w2 = w2.astype(dtype)
        b2 = place(p["b2a"], p["b2c"])
        wcl = jnp.zeros((1, lw), f32).at[:, half:half + H].set(p["wcl"].T)
        bcl = p["bcl"].reshape((1,))
        return {"w1": w1, "b1": b1, "w2": w2, "b2": b2, "wcl": wcl, "bcl": bcl}

    # Split path: each branch padded to Hp (multiple of 128) lanes, no
    # block-diagonal zero blocks for layer 2.
    Hp = _round_up(H, 128)

    def pad_cols(w, width):
        out = jnp.zeros((w.shape[0], width), f32)
        return out.at[:, :w.shape[1]].set(w)

    def pad_sq(w):
        out = jnp.zeros((Hp, Hp), f32)
        return out.at[:H, :H].set(w)

    w1 = jnp.zeros((num_inputs, 2 * Hp), f32)
    w1 = w1.at[:, :H].set(p["w1a"]).at[:, Hp:Hp + H].set(p["w1c"]).astype(dtype)
    b1 = jnp.zeros((1, 2 * Hp), f32)
    b1 = b1.at[:, :H].set(p["b1a"]).at[:, Hp:Hp + H].set(p["b1c"])
    return {
        "w1": w1, "b1": b1,
        "w2a": pad_sq(p["w2a"]).astype(dtype),
        "w2c": pad_sq(p["w2c"]).astype(dtype),
        "b2a": pad_cols(p["b2a"], Hp),
        "b2c": pad_cols(p["b2c"], Hp),
        "wcl": pad_cols(p["wcl"].T, Hp),
        "bcl": p["bcl"].reshape((1,)),
    }


def reference_forward(x, params):
    hc = jnp.tanh(x @ params["w1c"] + params["b1c"])
    hc = jnp.tanh(hc @ params["w2c"] + params["b2c"])
    value = hc @ params["wcl"] + params["bcl"]
    ha = jnp.tanh(x @ params["w1a"] + params["b1a"])
    ha = jnp.tanh(ha @ params["w2a"] + params["b2a"])
    return value, ha


# ---------------------------------------------------------------------------
# Demo / correctness checks
# ---------------------------------------------------------------------------

if __name__ == "__main__":
    key = jax.random.PRNGKey(0)
    k_x, k_p, k_p2 = jax.random.split(key, 3)

    batch, num_inputs, hidden_size = 16, 32, 64
    x = jax.random.normal(k_x, (batch, num_inputs), jnp.float32)
    rnn_hxs = jnp.zeros((batch, 1), jnp.float32)   # non-recurrent -> size 1
    masks = jnp.ones((batch, 1), jnp.float32)

    params = make_params(k_p, num_inputs, hidden_size)
    value_ref, actor_ref = reference_forward(x, params)

    # --- fused path, bf16 compute (default) ---
    packed_bf16 = pack_params(params, dtype=jnp.bfloat16)
    fwd_bf16 = jax.jit(functools.partial(mlp_base_forward,
                                         hidden_size=hidden_size, block_b=4096))
    value, actor, rnn_out = fwd_bf16(x, packed_bf16, rnn_hxs, masks)
    jax.block_until_ready((value, actor, rnn_out))
    assert value.shape == (batch, 1) and actor.shape == (batch, hidden_size)
    assert jnp.allclose(value, value_ref, atol=1e-1, rtol=1e-1)
    assert jnp.allclose(actor, actor_ref, atol=1e-1, rtol=1e-1)
    assert jnp.allclose(rnn_out, rnn_hxs)

    # --- fused path, f32 compute (tight check) ---
    packed_f32 = pack_params(params, dtype=jnp.float32)
    value32, actor32, _ = jax.jit(functools.partial(
        mlp_base_forward, hidden_size=hidden_size))(x, packed_f32, rnn_hxs, masks)
    jax.block_until_ready((value32, actor32))
    assert jnp.allclose(value32, value_ref, atol=1e-5, rtol=1e-5)
    assert jnp.allclose(actor32, actor_ref, atol=1e-5, rtol=1e-5)

    # --- split path (H > 64), bf16 compute ---
    hidden_big = 128
    params_big = make_params(k_p2, num_inputs, hidden_big)
    packed_big = pack_params(params_big, dtype=jnp.bfloat16)
    vref_b, aref_b = reference_forward(x, params_big)
    value_b, actor_b, _ = jax.jit(functools.partial(
        mlp_base_forward, hidden_size=hidden_big))(x, packed_big, rnn_hxs, masks)
    jax.block_until_ready((value_b, actor_b))
    assert value_b.shape == (batch, 1) and actor_b.shape == (batch, hidden_big)
    assert jnp.allclose(value_b, vref_b, atol=1e-1, rtol=1e-1)
    assert jnp.allclose(actor_b, aref_b, atol=1e-1, rtol=1e-1)

    print("KERNEL_OK")
</pallas_src>

<mosaic_0001>
module attributes {stable_mosaic.version = 11 : i64} {
  func.func @_mlpbase_fused_kernel(%arg0: i32, %arg1: memref<8x32xf32, #tpu.memory_space<vmem>>, %arg2: memref<32x128xbf16, #tpu.memory_space<vmem>>, %arg3: memref<1x128xf32, #tpu.memory_space<vmem>>, %arg4: memref<128x128xbf16, #tpu.memory_space<vmem>>, %arg5: memref<1x128xf32, #tpu.memory_space<vmem>>, %arg6: memref<1x128xf32, #tpu.memory_space<vmem>>, %arg7: memref<1xf32, #tpu.memory_space<smem>>, %arg8: memref<8x128xf32, #tpu.memory_space<vmem>>) attributes {dimension_semantics = [#tpu.dimension_semantics<parallel>], iteration_bounds = array<i64: 2>, scalar_prefetch = 0 : i64, scratch_operands = 0 : i64, tpu.core_type = #tpu.core_type<tc>, window_params = [{transform_indices = @transform_0, window_bounds = array<i64: 8, 32>}, {pipeline_mode = #tpu.pipeline_mode<synchronous>, transform_indices = @transform_1, window_bounds = array<i64: 32, 128>}, {pipeline_mode = #tpu.pipeline_mode<synchronous>, transform_indices = @transform_2, window_bounds = array<i64: 1, 128>}, {pipeline_mode = #tpu.pipeline_mode<synchronous>, transform_indices = @transform_3, window_bounds = array<i64: 128, 128>}, {pipeline_mode = #tpu.pipeline_mode<synchronous>, transform_indices = @transform_4, window_bounds = array<i64: 1, 128>}, {pipeline_mode = #tpu.pipeline_mode<synchronous>, transform_indices = @transform_5, window_bounds = array<i64: 1, 128>}, {transform_indices = @transform_6, window_bounds = array<i64: 1>}, {transform_indices = @transform_7, window_bounds = array<i64: 8, 128>}]} {
    %c0 = arith.constant 0 : index
    %c0_0 = arith.constant 0 : index
    %0 = vector.load %arg1[%c0, %c0_0] : memref<8x32xf32, #tpu.memory_space<vmem>>, vector<8x32xf32>
    %1 = arith.truncf %0 : vector<8x32xf32> to vector<8x32xbf16>
    %c0_1 = arith.constant 0 : index
    %c0_2 = arith.constant 0 : index
    %2 = vector.load %arg2[%c0_1, %c0_2] : memref<32x128xbf16, #tpu.memory_space<vmem>>, vector<32x128xbf16>
    %cst = arith.constant dense<0.000000e+00> : vector<8x128xf32>
    %3 = tpu.matmul %1, %2, %cst {dimension_numbers = #tpu.dot_dimension_numbers<[1], [0], [0], [1], [0, 0, 1, 1], [], []>} : vector<8x32xbf16>, vector<32x128xbf16>, vector<8x128xf32> -> vector<8x128xf32>
    %c0_3 = arith.constant 0 : index
    %c0_4 = arith.constant 0 : index
    %4 = vector.load %arg3[%c0_3, %c0_4] : memref<1x128xf32, #tpu.memory_space<vmem>>, vector<1x128xf32>
    %5 = vector.broadcast %4 : vector<1x128xf32> to vector<8x128xf32>
    %6 = arith.addf %3, %5 : vector<8x128xf32>
    %7 = math.tanh %6 : vector<8x128xf32>
    %8 = arith.truncf %7 : vector<8x128xf32> to vector<8x128xbf16>
    %c0_5 = arith.constant 0 : index
    %c0_6 = arith.constant 0 : index
    %9 = vector.load %arg4[%c0_5, %c0_6] : memref<128x128xbf16, #tpu.memory_space<vmem>>, vector<128x128xbf16>
    %cst_7 = arith.constant dense<0.000000e+00> : vector<8x128xf32>
    %10 = tpu.matmul %8, %9, %cst_7 {dimension_numbers = #tpu.dot_dimension_numbers<[1], [0], [0], [1], [0, 0, 1, 1], [], []>} : vector<8x128xbf16>, vector<128x128xbf16>, vector<8x128xf32> -> vector<8x128xf32>
    %c0_8 = arith.constant 0 : index
    %c0_9 = arith.constant 0 : index
    %11 = vector.load %arg5[%c0_8, %c0_9] : memref<1x128xf32, #tpu.memory_space<vmem>>, vector<1x128xf32>
    %12 = vector.broadcast %11 : vector<1x128xf32> to vector<8x128xf32>
    %13 = arith.addf %10, %12 : vector<8x128xf32>
    %14 = math.tanh %13 : vector<8x128xf32>
    %c0_10 = arith.constant 0 : index
    %c0_11 = arith.constant 0 : index
    %15 = vector.load %arg6[%c0_10, %c0_11] : memref<1x128xf32, #tpu.memory_space<vmem>>, vector<1x128xf32>
    %16 = vector.broadcast %15 : vector<1x128xf32> to vector<8x128xf32>
    %17 = arith.mulf %14, %16 : vector<8x128xf32>
    %cst_12 = arith.constant dense<0.000000e+00> : vector<8xf32>
    %18 = vector.multi_reduction <add>, %17, %cst_12 [1] : vector<8x128xf32> to vector<8xf32>
    %19 = vector.shape_cast %18 : vector<8xf32> to vector<8x1xf32>
    %c0_13 = arith.constant 0 : index
    %20 = memref.load %arg7[%c0_13] : memref<1xf32, #tpu.memory_space<smem>>
    %21 = vector.broadcast %20 : f32 to vector<8x1xf32>
    %22 = arith.addf %19, %21 : vector<8x1xf32>
    %23 = tpu.iota {dimensions = array<i32: 1>} : vector<8x128xi32>
    %c64_i32 = arith.constant 64 : i32
    %24 = vector.broadcast %c64_i32 : i32 to vector<8x128xi32>
    %25 = arith.cmpi eq, %23, %24 : vector<8x128xi32>
    %26 = vector.shape_cast %22 : vector<8x1xf32> to vector<8x1xf32>
    %27 = vector.broadcast %26 : vector<8x1xf32> to vector<8x128xf32>
    %28 = arith.select %25, %27, %14 : vector<8x128xi1>, vector<8x128xf32>
    %c0_14 = arith.constant 0 : index
    %c0_15 = arith.constant 0 : index
    %29 = vector.load %arg8[%c0_14, %c0_15] : memref<8x128xf32, #tpu.memory_space<vmem>>, vector<8x128xf32>
    tpu.vector_store %arg8[%c0_14, %c0_15], %28 {strides = array<i32>} : memref<8x128xf32, #tpu.memory_space<vmem>>, vector<8x128xf32>,
    return
  }
  func.func @transform_0(%arg0: i32) -> (i32, i32) {
    %c0_i32 = arith.constant 0 : i32
    %c0_i32_0 = arith.constant 0 : i32
    return %arg0, %c0_i32 : i32, i32
  }
  func.func @transform_1(%arg0: i32) -> (i32, i32) {
    %c0_i32 = arith.constant 0 : i32
    %c0_i32_0 = arith.constant 0 : i32
    %c0_i32_1 = arith.constant 0 : i32
    return %c0_i32, %c0_i32_0 : i32, i32
  }
  func.func @transform_2(%arg0: i32) -> (i32, i32) {
    %c0_i32 = arith.constant 0 : i32
    %c0_i32_0 = arith.constant 0 : i32
    %c0_i32_1 = arith.constant 0 : i32
    return %c0_i32, %c0_i32_0 : i32, i32
  }
  func.func @transform_3(%arg0: i32) -> (i32, i32) {
    %c0_i32 = arith.constant 0 : i32
    %c0_i32_0 = arith.constant 0 : i32
    %c0_i32_1 = arith.constant 0 : i32
    return %c0_i32, %c0_i32_0 : i32, i32
  }
  func.func @transform_4(%arg0: i32) -> (i32, i32) {
    %c0_i32 = arith.constant 0 : i32
    %c0_i32_0 = arith.constant 0 : i32
    %c0_i32_1 = arith.constant 0 : i32
    return %c0_i32, %c0_i32_0 : i32, i32
  }
  func.func @transform_5(%arg0: i32) -> (i32, i32) {
    %c0_i32 = arith.constant 0 : i32
    %c0_i32_0 = arith.constant 0 : i32
    %c0_i32_1 = arith.constant 0 : i32
    return %c0_i32, %c0_i32_0 : i32, i32
  }
  func.func @transform_6(%arg0: i32) -> i32 {
    %c0_i32 = arith.constant 0 : i32
    %c0_i32_0 = arith.constant 0 : i32
    return %c0_i32 : i32
  }
  func.func @transform_7(%arg0: i32) -> (i32, i32) {
    %c0_i32 = arith.constant 0 : i32
    %c0_i32_0 = arith.constant 0 : i32
    return %arg0, %c0_i32 : i32, i32
  }
}

</mosaic_0001>

<llo_original>
// kernel: mlp_base_forward.1
$region0: #{mlp_base_forward.1}
  #allocation0 [shape = 'u32[]', space=smem, size = 0x4, offset = 0x4, fixed_abs, tag = 'smem constant byte address 0x4 - core index']
  #allocation1 [shape = 'u32[144,128]{1,0:T(1,128)}', space=vmem, size = 0x12000, scoped, tag = 'internal scratch']
  #allocation2 [shape = 'f32[1]{0:T(128)S(6)}', space=smem, size = 0x200, scoped, tag = 'scoped memory for mlp_base_forward.1']
  %s0 = inlined_call_operand.hbm [shape: f32[16,32], index: 0, kind: input, shape index: {}]
  %s1 = inlined_call_operand.hbm [shape: bf16[32,128], index: 1, kind: input, shape index: {}]
  %s2 = inlined_call_operand.vmem [shape: f32[1,128], index: 2, kind: input, shape index: {}]
  %s3 = inlined_call_operand.hbm [shape: bf16[128,128], index: 3, kind: input, shape index: {}]
  %s4 = inlined_call_operand.vmem [shape: f32[1,128], index: 4, kind: input, shape index: {}]
  %s5 = inlined_call_operand.vmem [shape: f32[1,128], index: 5, kind: input, shape index: {}]
  %s6 = inlined_call_operand.<no memory space> [shape: f32[1], index: 6, kind: input, shape index: {}]
  %s7 = inlined_call_operand.vmem [shape: f32[16,128], index: 7, kind: output, shape index: {}]
  %s8 = sld [smem:[#allocation0]]
  $region73: #{mlp_base_forward.1} parent=0
    _
  %s10 = ssub.s32 1, %s8
  %s11 = scalar_select 0, %s10, %s8
  %12 = sst [smem:[#allocation2]] %s6
  $region1: #{mlp_base_forward.1} parent=0
    #allocation3 [shape = 'u8[8192]{0}', space=vmem, size = 0x2000, scoped, tag = 'input window, operand 0']
    #allocation4 [shape = 's32[2]{0}', space=sflag, size = 0x8, scoped, tag = 'scoped memory for mlp_base_forward.1']
    #allocation5 [shape = 'u8[8192]{0}', space=vmem, size = 0x2000, scoped, tag = 'input window, operand 1, single buffered']
    #allocation6 [shape = 's32[1]{0}', space=sflag, size = 0x4, scoped, tag = 'scoped memory for mlp_base_forward.1']
    #allocation7 [shape = 'u8[32768]{0}', space=vmem, size = 0x8000, scoped, tag = 'input window, operand 3, single buffered']
    %13 = vsyncpa [#allocation4], 0
    %s14 = scalar_lea.sflag [#allocation4], 1
    %15 = vsyncpa %s14, 0
    %16 = vsyncpa [#allocation6], 0
    loop: start=0, step=1, limit=4
    $region2: #{mlp_base_forward.1} parent=1 // loop_pre_header
      _
    $region3: #{mlp_base_forward.1} parent=1 // loop_header
      %s18 = sphi 0, %s22
      %p19 = scmp.ge.s32.totalorder %s18, 4
      %s28 = sphi 0, %s30
      %s31 = sphi 0, %s28
      %s32 = sphi 0, %s31
      %s48 = sphi 0, %s32
      %s52 = sphi 0, %s52
      %s54 = sphi 0, %s52
      %s55 = sphi 0, %s54
      %s69 = sphi 0, %s55
      %s73 = sphi 0, %s73
      %s75 = sphi 0, %s73
      %s76 = sphi 0, %s75
      %s90 = sphi 0, %s76
      %s94 = sphi 0, %s94
      %s96 = sphi 0, %s94
      %s97 = sphi 0, %s96
      %s111 = sphi 0, %s97
      %s115 = sphi 0, %s115
      %s117 = sphi 0, %s115
      %s118 = sphi 0, %s117
      %s132 = sphi 0, %s118
      %s136 = sphi 0, %s136
      %s138 = sphi 0, %s136
      %s139 = sphi 0, %s138
      %s153 = sphi 0, %s139
      %s157 = sphi 0, %s157
      %s159 = sphi 0, %s157
      %s160 = sphi 0, %s159
      %s174 = sphi 0, %s160
      %s180 = sphi 0, %s182
      %s183 = sphi 0, %s180
      %s184 = sphi 0, %s183
      %s200 = sphi 0, %s184
    $region4: #{mlp_base_forward.1} parent=1 // loop_header_branch
      %21 = sbr.rel (%p19) target = $region8
    $region5: #{mlp_base_forward.1} parent=1 // loop_body
      %s23 = ssub.s32 %s18, 1
      %s24 = ssub.s32 %s18, 2
      %s25 = sadd.s32 %s18, 1
      %s26 = ssub.s32 %s18, %s25
      %p27 = scmp.eq.s32.totalorder %s26, 0
      %s29 = sadd.s32 %s28, 1
      %s30 = scalar_select %p27, %s28, %s29
      %p33 = pneg %p27
      %p34 = scmp.eq.s32.totalorder %s18, 1
      %p35 = por %p33, %p34
      %p36 = scmp.ne.s32.totalorder %s28, %s31
      %p37 = scmp.eq.s32.totalorder %s18, 0
      %p38 = por %p36, %p37
      %p39 = scmp.ne.s32.totalorder %s28, %s31
      %p40 = scmp.eq.s32.totalorder %s23, 1
      %p41 = por %p39, %p40
      %p42 = scmp.ne.s32.totalorder %s31, %s32
      %p43 = scmp.eq.s32.totalorder %s23, 0
      %p44 = por %p42, %p43
      %p45 = scmp.ne.s32.totalorder %s31, %s32
      %p46 = scmp.eq.s32.totalorder %s24, 1
      %p47 = por %p45, %p46
      %p49 = scmp.ne.s32.totalorder %s32, %s48
      %p50 = scmp.eq.s32.totalorder %s24, 0
      %p51 = por %p49, %p50
      %s53 = sadd.s32 %s52, 1
      %p56 = scmp.eq.s32.totalorder %s18, 1
      %p57 = scmp.ne.s32.totalorder %s52, %s54
      %p58 = scmp.eq.s32.totalorder %s18, 0
      %p59 = por %p57, %p58
      %p60 = scmp.ne.s32.totalorder %s52, %s54
      %p61 = scmp.eq.s32.totalorder %s23, 1
      %p62 = por %p60, %p61
      %p63 = scmp.ne.s32.totalorder %s54, %s55
      %p64 = scmp.eq.s32.totalorder %s23, 0
      %p65 = por %p63, %p64
      %p66 = scmp.ne.s32.totalorder %s54, %s55
      %p67 = scmp.eq.s32.totalorder %s24, 1
      %p68 = por %p66, %p67
      %p70 = scmp.ne.s32.totalorder %s55, %s69
      %p71 = scmp.eq.s32.totalorder %s24, 0
      %p72 = por %p70, %p71
      %s74 = sadd.s32 %s73, 1
      %p77 = scmp.eq.s32.totalorder %s18, 1
      %p78 = scmp.ne.s32.totalorder %s73, %s75
      %p79 = scmp.eq.s32.totalorder %s18, 0
      %p80 = por %p78, %p79
      %p81 = scmp.ne.s32.totalorder %s73, %s75
      %p82 = scmp.eq.s32.totalorder %s23, 1
      %p83 = por %p81, %p82
      %p84 = scmp.ne.s32.totalorder %s75, %s76
      %p85 = scmp.eq.s32.totalorder %s23, 0
      %p86 = por %p84, %p85
      %p87 = scmp.ne.s32.totalorder %s75, %s76
      %p88 = scmp.eq.s32.totalorder %s24, 1
      %p89 = por %p87, %p88
      %p91 = scmp.ne.s32.totalorder %s76, %s90
      %p92 = scmp.eq.s32.totalorder %s24, 0
      %p93 = por %p91, %p92
      %s95 = sadd.s32 %s94, 1
      %p98 = scmp.eq.s32.totalorder %s18, 1
      %p99 = scmp.ne.s32.totalorder %s94, %s96
      %p100 = scmp.eq.s32.totalorder %s18, 0
      %p101 = por %p99, %p100
      %p102 = scmp.ne.s32.totalorder %s94, %s96
      %p103 = scmp.eq.s32.totalorder %s23, 1
      %p104 = por %p102, %p103
      %p105 = scmp.ne.s32.totalorder %s96, %s97
      %p106 = scmp.eq.s32.totalorder %s23, 0
      %p107 = por %p105, %p106
      %p108 = scmp.ne.s32.totalorder %s96, %s97
      %p109 = scmp.eq.s32.totalorder %s24, 1
      %p110 = por %p108, %p109
      %p112 = scmp.ne.s32.totalorder %s97, %s111
      %p113 = scmp.eq.s32.totalorder %s24, 0
      %p114 = por %p112, %p113
      %s116 = sadd.s32 %s115, 1
      %p119 = scmp.eq.s32.totalorder %s18, 1
      %p120 = scmp.ne.s32.totalorder %s115, %s117
      %p121 = scmp.eq.s32.totalorder %s18, 0
      %p122 = por %p120, %p121
      %p123 = scmp.ne.s32.totalorder %s115, %s117
      %p124 = scmp.eq.s32.totalorder %s23, 1
      %p125 = por %p123, %p124
      %p126 = scmp.ne.s32.totalorder %s117, %s118
      %p127 = scmp.eq.s32.totalorder %s23, 0
      %p128 = por %p126, %p127
      %p129 = scmp.ne.s32.totalorder %s117, %s118
      %p130 = scmp.eq.s32.totalorder %s24, 1
      %p131 = por %p129, %p130
      %p133 = scmp.ne.s32.totalorder %s118, %s132
      %p134 = scmp.eq.s32.totalorder %s24, 0
      %p135 = por %p133, %p134
      %s137 = sadd.s32 %s136, 1
      %p140 = scmp.eq.s32.totalorder %s18, 1
      %p141 = scmp.ne.s32.totalorder %s136, %s138
      %p142 = scmp.eq.s32.totalorder %s18, 0
      %p143 = por %p141, %p142
      %p144 = scmp.ne.s32.totalorder %s136, %s138
      %p145 = scmp.eq.s32.totalorder %s23, 1
      %p146 = por %p144, %p145
      %p147 = scmp.ne.s32.totalorder %s138, %s139
      %p148 = scmp.eq.s32.totalorder %s23, 0
      %p149 = por %p147, %p148
      %p150 = scmp.ne.s32.totalorder %s138, %s139
      %p151 = scmp.eq.s32.totalorder %s24, 1
      %p152 = por %p150, %p151
      %p154 = scmp.ne.s32.totalorder %s139, %s153
      %p155 = scmp.eq.s32.totalorder %s24, 0
      %p156 = por %p154, %p155
      %s158 = sadd.s32 %s157, 1
      %p161 = scmp.eq.s32.totalorder %s18, 1
      %p162 = scmp.ne.s32.totalorder %s157, %s159
      %p163 = scmp.eq.s32.totalorder %s18, 0
      %p164 = por %p162, %p163
      %p165 = scmp.ne.s32.totalorder %s157, %s159
      %p166 = scmp.eq.s32.totalorder %s23, 1
      %p167 = por %p165, %p166
      %p168 = scmp.ne.s32.totalorder %s159, %s160
      %p169 = scmp.eq.s32.totalorder %s23, 0
      %p170 = por %p168, %p169
      %p171 = scmp.ne.s32.totalorder %s159, %s160
      %p172 = scmp.eq.s32.totalorder %s24, 1
      %p173 = por %p171, %p172
      %p175 = scmp.ne.s32.totalorder %s160, %s174
      %p176 = scmp.eq.s32.totalorder %s24, 0
      %p177 = por %p175, %p176
      %s178 = ssub.s32 %s18, %s25
      %p179 = scmp.eq.s32.totalorder %s178, 0
      %s181 = sadd.s32 %s180, 1
      %s182 = scalar_select %p179, %s180, %s181
      %p185 = pneg %p179
      %p186 = scmp.eq.s32.totalorder %s18, 1
      %p187 = por %p185, %p186
      %p188 = scmp.ne.s32.totalorder %s180, %s183
      %p189 = scmp.eq.s32.totalorder %s18, 0
      %p190 = por %p188, %p189
      %p191 = scmp.ne.s32.totalorder %s180, %s183
      %p192 = scmp.eq.s32.totalorder %s23, 1
      %p193 = por %p191, %p192
      %p194 = scmp.ne.s32.totalorder %s183, %s184
      %p195 = scmp.eq.s32.totalorder %s23, 0
      %p196 = por %p194, %p195
      %p197 = scmp.ne.s32.totalorder %s183, %s184
      %p198 = scmp.eq.s32.totalorder %s24, 1
      %p199 = por %p197, %p198
      %p201 = scmp.ne.s32.totalorder %s184, %s200
      %p202 = scmp.eq.s32.totalorder %s24, 0
      %p203 = por %p201, %p202
      %p204 = scmp.le.s32.totalorder 1, %s18
      %p205 = scmp.lt.s32.totalorder %s18, 3
      %p206 = pnand %p204, %p205
      %p207 = pneg %p206
      // Predicated region
      $region9: #{mlp_base_forward.1} parent=5 // pred_check
        _
      $region10: #{mlp_base_forward.1} parent=5 // pred_check_branch
        %209 = sbr.rel (%p206) target = $region12
      $region11: #{mlp_base_forward.1} parent=5 // pred_region
        %s210 = ssub.s32 %s18, 1
        // Predicated region
        $region13: #{mlp_base_forward.1} parent=11 // pred_check
          %p211 = pneg %p65
        $region14: #{mlp_base_forward.1} parent=11 // pred_check_branch
          %213 = sbr.rel (%p211) target = $region16
        $region15: #{mlp_base_forward.1} parent=11 // pred_region
          %s215 = ssub.s32 256, 256
          %216 = vsyncadd [#allocation6], %s215
          %s217 = sshll.u32 [#allocation5], 4
          %s218 = int_to_ptr.vmem [resolvable:$true] %s217
          %223 = dma.hbm_to_vmem [thread:$0]  %s1, 256, %s218, [#allocation6], 64, 64, 4
        $region16: #{mlp_base_forward.1} parent=11 // pred_fallthru
          _
        // Predicated region
        $region17: #{mlp_base_forward.1} parent=11 // pred_check
          %p224 = pneg %p86
        $region18: #{mlp_base_forward.1} parent=11 // pred_check_branch
          %226 = sbr.rel (%p224) target = $region20
        $region19: #{mlp_base_forward.1} parent=11 // pred_region
          _
        $region20: #{mlp_base_forward.1} parent=11 // pred_fallthru
          _
        // Predicated region
        $region21: #{mlp_base_forward.1} parent=11 // pred_check
          %p227 = pneg %p107
        $region22: #{mlp_base_forward.1} parent=11 // pred_check_branch
          %229 = sbr.rel (%p227) target = $region24
        $region23: #{mlp_base_forward.1} parent=11 // pred_region
          %s231 = ssub.s32 1024, 1024
          %232 = vsyncadd [#allocation6], %s231
          %s233 = sshll.u32 [#allocation7], 4
          %s234 = int_to_ptr.vmem [resolvable:$true] %s233
          %239 = dma.hbm_to_vmem [thread:$0]  %s3, 1024, %s234, [#allocation6], 64, 64, 4
        $region24: #{mlp_base_forward.1} parent=11 // pred_fallthru
          _
        // Predicated region
        $region25: #{mlp_base_forward.1} parent=11 // pred_check
          %p240 = pneg %p128
        $region26: #{mlp_base_forward.1} parent=11 // pred_check_branch
          %242 = sbr.rel (%p240) target = $region28
        $region27: #{mlp_base_forward.1} parent=11 // pred_region
          _
        $region28: #{mlp_base_forward.1} parent=11 // pred_fallthru
          _
        // Predicated region
        $region29: #{mlp_base_forward.1} parent=11 // pred_check
          %p243 = pneg %p149
        $region30: #{mlp_base_forward.1} parent=11 // pred_check_branch
          %245 = sbr.rel (%p243) target = $region32
        $region31: #{mlp_base_forward.1} parent=11 // pred_region
          _
        $region32: #{mlp_base_forward.1} parent=11 // pred_fallthru
          _
        // Predicated region
        $region33: #{mlp_base_forward.1} parent=11 // pred_check
          %p246 = pneg %p170
        $region34: #{mlp_base_forward.1} parent=11 // pred_check_branch
          %248 = sbr.rel (%p246) target = $region36
        $region35: #{mlp_base_forward.1} parent=11 // pred_region
          _
        $region36: #{mlp_base_forward.1} parent=11 // pred_fallthru
          _
      $region12: #{mlp_base_forward.1} parent=5 // pred_fallthru
        _
      %p249 = scmp.lt.s32.totalorder %s18, 2
      // Predicated region
      $region37: #{mlp_base_forward.1} parent=5 // pred_check
        %p250 = pneg %p249
      $region38: #{mlp_base_forward.1} parent=5 // pred_check_branch
        %252 = sbr.rel (%p250) target = $region40
      $region39: #{mlp_base_forward.1} parent=5 // pred_region
        // Predicated region
        $region41: #{mlp_base_forward.1} parent=39 // pred_check
          %p253 = pneg %p38
        $region42: #{mlp_base_forward.1} parent=39 // pred_check_branch
          %255 = sbr.rel (%p253) target = $region44
        $region43: #{mlp_base_forward.1} parent=39 // pred_region
          %s256 = sand.u32 %s28, 1
          %s257 = scalar_lea.sflag [#allocation4], %s256
          %s258 = sand.u32 %s28, 1
          %s259 = smul.addr %s258, 8
          %s260 = scalar_lea.vmem [#allocation3], %s259
          %s262 = ssub.s32 128, 128
          %263 = vsyncadd %s257, %s262
          %s264 = smul.addr %s18, 128
          %s265 = scalar_lea.hbm %s0, %s264
          %s267 = sshll.u32 %s260, 4
          %s268 = int_to_ptr.vmem [resolvable:$true] %s267
          %270 = dma.hbm_to_vmem [thread:$0]  %s265, 128, %s268, %s257
        $region44: #{mlp_base_forward.1} parent=39 // pred_fallthru
          _
      $region40: #{mlp_base_forward.1} parent=5 // pred_fallthru
        _
      %p271 = scmp.le.s32.totalorder 1, %s18
      %p272 = scmp.lt.s32.totalorder %s18, 3
      %p273 = pnand %p271, %p272
      %p274 = pneg %p273
      // Predicated region
      $region45: #{mlp_base_forward.1} parent=5 // pred_check
        _
      $region46: #{mlp_base_forward.1} parent=5 // pred_check_branch
        %276 = sbr.rel (%p273) target = $region48
      $region47: #{mlp_base_forward.1} parent=5 // pred_region
        %s277 = ssub.s32 %s18, 1
        %s278 = sand.u32 %s31, 1
        %s279 = scalar_lea.sflag [#allocation4], %s278
        %s280 = sand.u32 %s31, 1
        %s281 = smul.addr %s280, 8
        %s282 = scalar_lea.vmem [#allocation3], %s281
        // Predicated region
        $region49: #{mlp_base_forward.1} parent=47 // pred_check
          %p283 = pneg %p44
        $region50: #{mlp_base_forward.1} parent=47 // pred_check_branch
          %285 = sbr.rel (%p283) target = $region52
        $region51: #{mlp_base_forward.1} parent=47 // pred_region
          %286 = dma.done %s279, 128
        $region52: #{mlp_base_forward.1} parent=47 // pred_fallthru
          _
        // Predicated region
        $region53: #{mlp_base_forward.1} parent=47 // pred_check
          %p287 = pneg %p65
        $region54: #{mlp_base_forward.1} parent=47 // pred_check_branch
          %289 = sbr.rel (%p287) target = $region56
        $region55: #{mlp_base_forward.1} parent=47 // pred_region
          %290 = dma.done [#allocation6], 256
        $region56: #{mlp_base_forward.1} parent=47 // pred_fallthru
          _
        // Predicated region
        $region57: #{mlp_base_forward.1} parent=47 // pred_check
          %p291 = pneg %p107
        $region58: #{mlp_base_forward.1} parent=47 // pred_check_branch
          %293 = sbr.rel (%p291) target = $region60
        $region59: #{mlp_base_forward.1} parent=47 // pred_region
          %294 = dma.done [#allocation6], 1024
        $region60: #{mlp_base_forward.1} parent=47 // pred_fallthru
          _
        %s295 = sand.u32 %s31, 1
        %s296 = scalar_lea.sflag [#allocation4], %s295
        %s297 = sand.u32 %s31, 1
        %s298 = smul.addr %s297, 8
        %s299 = scalar_lea.vmem [#allocation3], %s298
        %p300 = pneg %p44
        %p301 = pneg %p41
        %p302 = pneg %p65
        %p303 = pneg %p62
        %p304 = pneg %p86
        %p305 = pneg %p83
        %p306 = pneg %p107
        %p307 = pneg %p104
        %p308 = pneg %p128
        %p309 = pneg %p125
        %p310 = pneg %p149
        %p311 = pneg %p146
        %p312 = pneg %p170
        %p313 = pneg %p167
        %p314 = pneg %p196
        %p315 = pneg %p193
        %p316 = scmp.lt.s32.totalorder %s23, 1
        %s317 = scalar_select %p316, %s23, 1
        %s318 = smul.addr %s317, 8
        %s319 = scalar_lea.vmem %s7, %s318
        %p320 = scmp.lt.s32.totalorder %s23, 1
        %s321 = scalar_select %p320, %s23, 1
        %s322 = smul.addr %s321, 8
        %s323 = scalar_lea.vmem %s7, %s322
        %v325 = vld [vmem:[%s282] sm:$0xff]
        %v326 = vpack.c.bf16 %v325, %v325
        %v327 = vld [vmem:[#allocation5] sm:$0xf]
        %v328 = vld [vmem:[#allocation5 + $0x4] sm:$0xf]
        %v329 = vld [vmem:[#allocation5 + $0x8] sm:$0xf]
        %v330 = vld [vmem:[#allocation5 + $0xc] sm:$0xf]
        %v331 = vld [vmem:[%s2] sm:$0x1]
        %v333 = vlaneseq
        %v334 = vshrl.u32 %v333, 7
        %v335 = vsub.s32 0, %v334
        %v336 = vrot.slane %v331, %v335
        %v342 = vunpack.c.l.b16 %v327
        %v343 = vunpack.c.l.b16 %v328
        %v344 = vunpack.c.l.b16 %v329
        %v345 = vunpack.c.l.b16 %v330
        %v346 = vpack.c.b16 %v343, %v342
        %v347 = vpack.c.b16 %v345, %v344
        %vm350 = vcmask 261120
        %v352 = vsel %vm350, %v326, 0
        %354 = vmatprep.subr.bf16.mxu0 0
        %355 = vmatpush1.bf16.msra.mxu0 0
        %356 = vmatprep.subr.bf16.mxu0 0
        %357 = vmatpush1.bf16.msra.mxu0 0
        %358 = vmatprep.subr.bf16.mxu0 0
        %359 = vmatpush1.bf16.msra.mxu0 0
        %360 = vmatprep.subr.bf16.mxu0 0
        %361 = vmatpush1.bf16.msra.mxu0 0
        %362 = vmatprep.subr.bf16.mxu0 0
        %363 = vmatpush1.bf16.msra.mxu0 0
        %364 = vmatprep.subr.bf16.mxu0 0
        %365 = vmatpush1.bf16.msra.mxu0 0
        %366 = vmatprep.subr.bf16.mxu0 0
        %367 = vmatpush1.bf16.msra.mxu0 %v347
        %368 = vmatprep.subr.bf16.mxu0 0
        %369 = vmatpush1.bf16.msra.mxu0 %v346
        %370 = vmatprep.subr.bf16.mxu0 0
        %371 = vmatpush2.bf16.msra.mxu0 0
        %372 = vmatprep.subr.bf16.mxu0 0
        %373 = vmatpush2.bf16.msra.mxu0 0
        %374 = vmatprep.subr.bf16.mxu0 0
        %375 = vmatpush2.bf16.msra.mxu0 0
        %376 = vmatprep.subr.bf16.mxu0 0
        %377 = vmatpush2.bf16.msra.mxu0 0
        %378 = vmatprep.subr.bf16.mxu0 0
        %379 = vmatpush2.bf16.msra.mxu0 0
        %380 = vmatprep.subr.bf16.mxu0 0
        %381 = vmatpush2.bf16.msra.mxu0 0
        %382 = vmatprep.subr.bf16.mxu0 0
        %383 = vmatpush2.bf16.msra.mxu0 0
        %384 = vmatprep.subr.bf16.mxu0 0
        %385 = vmatpush2.bf16.msra.mxu0 0
        %386 = vmatprep.mubr.bf16.mxu0 0
        %387 = vmatmul.mubr.bf16.gmra.mxu0 %v352
        %v388 = vpop.f32.mrf.mxu0
        %v389 = vadd.f32 %v336, %v388
        %v390 = vpop.f32.mrf.mxu0
        %v391 = vpop.f32.mrf.mxu0
        %v392 = vpop.f32.mrf.mxu0
        %393 = vdwg.mxu0
        %v394 = vtanh.pop %v389
        %v395 = vpack.c.bf16 %v394, %v394
        %v396 = vld [vmem:[#allocation7] sm:$0xf]
        %v397 = vld [vmem:[#allocation7 + $0x4] sm:$0xf]
        %v398 = vld [vmem:[#allocation7 + $0x8] sm:$0xf]
        %v399 = vld [vmem:[#allocation7 + $0xc] sm:$0xf]
        %v400 = vld [vmem:[#allocation7 + $0x10] sm:$0xf]
        %v401 = vld [vmem:[#allocation7 + $0x14] sm:$0xf]
        %v402 = vld [vmem:[#allocation7 + $0x18] sm:$0xf]
        %v403 = vld [vmem:[#allocation7 + $0x1c] sm:$0xf]
        %v404 = vld [vmem:[#allocation7 + $0x20] sm:$0xf]
        %v405 = vld [vmem:[#allocation7 + $0x24] sm:$0xf]
        %v406 = vld [vmem:[#allocation7 + $0x28] sm:$0xf]
        %v407 = vld [vmem:[#allocation7 + $0x2c] sm:$0xf]
        %v408 = vld [vmem:[#allocation7 + $0x30] sm:$0xf]
        %v409 = vld [vmem:[#allocation7 + $0x34] sm:$0xf]
        %v410 = vld [vmem:[#allocation7 + $0x38] sm:$0xf]
        %v411 = vld [vmem:[#allocation7 + $0x3c] sm:$0xf]
        %v412 = vld [vmem:[%s4] sm:$0x1]
        %v414 = vlaneseq
        %v415 = vshrl.u32 %v414, 7
        %v416 = vsub.s32 0, %v415
        %v417 = vrot.slane %v412, %v416
        %v435 = vunpack.c.l.b16 %v396
        %v436 = vunpack.c.l.b16 %v397
        %v437 = vunpack.c.l.b16 %v398
        %v438 = vunpack.c.l.b16 %v399
        %v439 = vunpack.c.l.b16 %v400
        %v440 = vunpack.c.l.b16 %v401
        %v441 = vunpack.c.l.b16 %v402
        %v442 = vunpack.c.l.b16 %v403
        %v443 = vunpack.c.l.b16 %v404
        %v444 = vunpack.c.l.b16 %v405
        %v445 = vunpack.c.l.b16 %v406
        %v446 = vunpack.c.l.b16 %v407
        %v447 = vunpack.c.l.b16 %v408
        %v448 = vunpack.c.l.b16 %v409
        %v449 = vunpack.c.l.b16 %v410
        %v450 = vunpack.c.l.b16 %v411
        %v451 = vpack.c.b16 %v436, %v435
        %v452 = vpack.c.b16 %v438, %v437
        %v453 = vpack.c.b16 %v440, %v439
        %v454 = vpack.c.b16 %v442, %v441
        %v455 = vpack.c.b16 %v444, %v443
        %v456 = vpack.c.b16 %v446, %v445
        %v457 = vpack.c.b16 %v448, %v447
        %v458 = vpack.c.b16 %v450, %v449
        %467 = vmatprep.subr.bf16.mxu0 0
        %468 = vmatpush1.bf16.msra.mxu0 %v458
        %469 = vmatprep.subr.bf16.mxu0 0
        %470 = vmatpush1.bf16.msra.mxu0 %v457
        %471 = vmatprep.subr.bf16.mxu0 0
        %472 = vmatpush1.bf16.msra.mxu0 %v456
        %473 = vmatprep.subr.bf16.mxu0 0
        %474 = vmatpush1.bf16.msra.mxu0 %v455
        %475 = vmatprep.subr.bf16.mxu0 0
        %476 = vmatpush1.bf16.msra.mxu0 %v454
        %477 = vmatprep.subr.bf16.mxu0 0
        %478 = vmatpush1.bf16.msra.mxu0 %v453
        %479 = vmatprep.subr.bf16.mxu0 0
        %480 = vmatpush1.bf16.msra.mxu0 %v452
        %481 = vmatprep.subr.bf16.mxu0 0
        %482 = vmatpush1.bf16.msra.mxu0 %v451
        %483 = vmatprep.subr.bf16.mxu0 0
        %484 = vmatpush2.bf16.msra.mxu0 0
        %485 = vmatprep.subr.bf16.mxu0 0
        %486 = vmatpush2.bf16.msra.mxu0 0
        %487 = vmatprep.subr.bf16.mxu0 0
        %488 = vmatpush2.bf16.msra.mxu0 0
        %489 = vmatprep.subr.bf16.mxu0 0
        %490 = vmatpush2.bf16.msra.mxu0 0
        %491 = vmatprep.subr.bf16.mxu0 0
        %492 = vmatpush2.bf16.msra.mxu0 0
        %493 = vmatprep.subr.bf16.mxu0 0
        %494 = vmatpush2.bf16.msra.mxu0 0
        %495 = vmatprep.subr.bf16.mxu0 0
        %496 = vmatpush2.bf16.msra.mxu0 0
        %497 = vmatprep.subr.bf16.mxu0 0
        %498 = vmatpush2.bf16.msra.mxu0 0
        %499 = vmatprep.mubr.bf16.mxu0 0
        %500 = vmatmul.mubr.bf16.gmra.mxu0 %v395
        %v501 = vpop.f32.mrf.mxu0
        %v502 = vadd.f32 %v417, %v501
        %v503 = vpop.f32.mrf.mxu0
        %v504 = vpop.f32.mrf.mxu0
        %v505 = vpop.f32.mrf.mxu0
        %506 = vdwg.mxu0
        %v507 = vtanh.pop %v502
        %v508 = vld [vmem:[%s5] sm:$0x1]
        %v510 = vlaneseq
        %v511 = vshrl.u32 %v510, 7
        %v512 = vsub.s32 0, %v511
        %v513 = vrot.slane %v508, %v512
        %v515 = vmul.f32 %v507, %v513
        %516 = vadd.xlane.f32.xlu0 %v515
        %v517 = vpop.xlane.xlu0 %516
        %s518 = sld [smem:[#allocation2]]
        %v519 = vstv %s518
        %v520 = vadd.f32 %v517, %v519
        %v521 = vlaneseq
        %v522 = vand.u32 %v521, 127
        %vm523 = vcmp.eq.s32.totalorder %v522, 64
        %v524 = vsel %vm523, %v520, %v507
        %525 = vst [vmem:[%s323] sm:$0xff] %v524
        %p526 = scmp.lt.s32.totalorder %s23, 1
        %s527 = scalar_select %p526, %s23, 1
        %s528 = smul.addr %s527, 8
        %s529 = scalar_lea.vmem %s7, %s528
        // Predicated region
        $region61: #{mlp_base_forward.1} parent=47 // pred_check
          %p530 = pneg %p193
        $region62: #{mlp_base_forward.1} parent=47 // pred_check_branch
          %532 = sbr.rel (%p530) target = $region64
        $region63: #{mlp_base_forward.1} parent=47 // pred_region
          _
        $region64: #{mlp_base_forward.1} parent=47 // pred_fallthru
          _
      $region48: #{mlp_base_forward.1} parent=5 // pred_fallthru
        _
      %p533 = scmp.le.s32.totalorder 2, %s18
      // Predicated region
      $region65: #{mlp_base_forward.1} parent=5 // pred_check
        %p534 = pneg %p533
      $region66: #{mlp_base_forward.1} parent=5 // pred_check_branch
        %536 = sbr.rel (%p534) target = $region68
      $region67: #{mlp_base_forward.1} parent=5 // pred_region
        %s537 = ssub.s32 %s18, 2
        // Predicated region
        $region69: #{mlp_base_forward.1} parent=67 // pred_check
          %p538 = pneg %p199
        $region70: #{mlp_base_forward.1} parent=67 // pred_check_branch
          %540 = sbr.rel (%p538) target = $region72
        $region71: #{mlp_base_forward.1} parent=67 // pred_region
          %p541 = scmp.lt.s32.totalorder %s24, 1
          %s542 = scalar_select %p541, %s24, 1
          %s543 = smul.addr %s542, 8
          %s544 = scalar_lea.vmem %s7, %s543
        $region72: #{mlp_base_forward.1} parent=67 // pred_fallthru
          _
      $region68: #{mlp_base_forward.1} parent=5 // pred_fallthru
        _
    $region6: #{mlp_base_forward.1} parent=1 // loop_footer
      %s22 = sadd.s32 1, %s18
    $region7: #{mlp_base_forward.1} parent=1 // loop_footer_branch
      %17 = sbr.rel target = $region3
    $region8: #{mlp_base_forward.1} parent=1 // loop_exit
      _
    %545 = vsyncpa [#allocation4], 1
    %s546 = scalar_lea.sflag [#allocation4], 1
    %547 = vsyncpa %s546, 1
    %548 = vsyncpa [#allocation6], 1

</llo_original>
